<compile_context>
chip_gen: v7x
topology: tpu7x:2x2x1
jax: 0.10.0
libtpu: 0.0.40
codegen_flags: <defaults>
</compile_context>

<pallas_src>
import math

import jax
import jax.numpy as jnp
from jax.experimental import pallas as pl
from jax.experimental.pallas import tpu as pltpu


def _passthrough_kernel(w_ref, x_ref, o_ref):
    # w_ref lives in SMEM: a single scalar parameter.
    # bias == 0 by construction; cast to the tile dtype so a bf16 input is
    # never promoted to f32 on the VPU path.
    bias = (w_ref[0] * 0.0).astype(x_ref.dtype)
    o_ref[...] = x_ref[...] + bias


def _pick_block_bytes_and_vmem_limit():
    """Per-TPU-generation block size / scoped-VMEM limit."""
    try:
        kind = jax.devices()[0].device_kind.lower()
    except Exception:  # pragma: no cover - defensive
        kind = ""
    if "v5" in kind:          # v5e / v5p: ~0.8 TB/s HBM, 16 MiB default scoped VMEM
        return 2 << 20, None  # 2 MiB x 2 refs x 2 buffers = 8 MiB, fits default
    if "v6" in kind:          # v6e: ~1.4 TB/s HBM, 32 MiB default scoped VMEM
        return 4 << 20, None  # 4 MiB x 4 = 16 MiB, fits default
    if "7" in kind:           # v7x: ~3.2 TB/s HBM, 32/64 MiB scoped/physical VMEM
        return 8 << 20, 48 << 20
    return 4 << 20, 48 << 20  # unknown chip: safe middle ground


def single_point_pass_through(empirical: jax.Array, w: jax.Array,
                              *, donate: bool = False) -> jax.Array:
    """Returns `empirical + w * 0.0` computed in a Pallas kernel."""
    orig_shape = empirical.shape
    dtype = empirical.dtype
    itemsize = jnp.dtype(dtype).itemsize
    total = int(math.prod(orig_shape)) if orig_shape else 1

    # ---- Lane-dense slab (rows, lanes), built with reshapes only (no copies).
    lanes = None
    for cand in (4096, 2048, 1024, 512, 256, 128):
        if total % cand == 0:
            lanes = cand
            break
    if lanes is None:
        # Fallback: natural last dim as the lane axis; blocks span the full
        # last dim so the (8,128) divisibility rule is satisfied by equality.
        lanes = orig_shape[-1] if len(orig_shape) >= 1 else 1
    rows = total // lanes
    x2d = empirical.reshape(rows, lanes)

    # ---- Block sizing.
    block_bytes, vmem_limit = _pick_block_bytes_and_vmem_limit()
    row_align = max(8, 32 // itemsize)            # f32->8, bf16->16, int8->32
    row_bytes = max(lanes * itemsize, 1)
    rows_target = max(row_align,
                      (block_bytes // row_bytes) // row_align * row_align)

    if rows <= rows_target or rows < row_align:
        block_rows = rows                         # single block == full dim
    else:
        block_rows = rows_target                  # multiple of row_align (>=8)
    grid = (pl.cdiv(rows, block_rows),)           # ragged last block is masked

    compiler_kwargs = dict(dimension_semantics=("parallel",))
    if vmem_limit is not None:
        compiler_kwargs["vmem_limit_bytes"] = vmem_limit

    call_kwargs = {}
    if donate:
        # Only alias when the caller actually donates 'empirical'; otherwise
        # XLA inserts a defensive full copy and aliasing is a net loss.
        call_kwargs["input_output_aliases"] = {1: 0}

    out2d = pl.pallas_call(
        _passthrough_kernel,
        out_shape=jax.ShapeDtypeStruct((rows, lanes), dtype),
        grid_spec=pltpu.PrefetchScalarGridSpec(
            num_scalar_prefetch=0,
            grid=grid,
            in_specs=[
                pl.BlockSpec(memory_space=pltpu.MemorySpace.SMEM),    # scalar w
                pl.BlockSpec((block_rows, lanes), lambda i: (i, 0)),  # input
            ],
            out_specs=pl.BlockSpec((block_rows, lanes), lambda i: (i, 0)),
        ),
        compiler_params=pltpu.CompilerParams(**compiler_kwargs),
        cost_estimate=pl.CostEstimate(
            flops=total,
            transcendentals=0,
            bytes_accessed=2 * total * itemsize,
        ),
        **call_kwargs,
    )(w.astype(jnp.float32), x2d)

    return out2d.reshape(orig_shape)


class SinglePointPassThroughPallas:
    """Mirror of the PyTorch module: holds the scalar parameter `w`."""

    def __init__(self):
        # torch.zeros(1) -> deterministic zero-initialized scalar parameter.
        self.w = jnp.zeros((1,), dtype=jnp.float32)

    def __call__(self, batch):
        return {"single": single_point_pass_through(batch["empirical"], self.w)}


if __name__ == "__main__":
    key = jax.random.PRNGKey(0)
    # Small shapes: batch=2, snapshots=8, features=128 (lane-dense last dim).
    B, S, F = 2, 8, 128
    empirical = jax.random.normal(key, (B, S, F), dtype=jnp.float32)
    batch = {"empirical": empirical}

    model = SinglePointPassThroughPallas()
    out = model(batch)
    result = jax.block_until_ready(out["single"])

    # Forward semantics check: output must equal the input exactly.
    assert result.shape == empirical.shape
    assert result.dtype == empirical.dtype
    assert bool(jnp.all(result == empirical))

    print("KERNEL_OK")
</pallas_src>

<mosaic_0001>
module attributes {stable_mosaic.version = 11 : i64} {
  func.func @_passthrough_kernel(%arg0: i32, %arg1: memref<1xf32, #tpu.memory_space<smem>>, %arg2: memref<1x2048xf32, #tpu.memory_space<vmem>>, %arg3: memref<1x2048xf32, #tpu.memory_space<vmem>>) attributes {dimension_semantics = [#tpu.dimension_semantics<parallel>], iteration_bounds = array<i64: 1>, scalar_prefetch = 0 : i64, scratch_operands = 0 : i64, tpu.core_type = #tpu.core_type<tc>, window_params = [{transform_indices = @transform_0, window_bounds = array<i64: 1>}, {transform_indices = @transform_1, window_bounds = array<i64: 1, 2048>}, {transform_indices = @transform_2, window_bounds = array<i64: 1, 2048>}]} {
    %c0 = arith.constant 0 : index
    %0 = memref.load %arg1[%c0] : memref<1xf32, #tpu.memory_space<smem>>
    %cst = arith.constant 0.000000e+00 : f32
    %1 = arith.mulf %0, %cst : f32
    %c0_0 = arith.constant 0 : index
    %c0_1 = arith.constant 0 : index
    %2 = vector.load %arg2[%c0_0, %c0_1] : memref<1x2048xf32, #tpu.memory_space<vmem>>, vector<1x2048xf32>
    %3 = vector.broadcast %1 : f32 to vector<1x2048xf32>
    %4 = arith.addf %2, %3 : vector<1x2048xf32>
    %c0_2 = arith.constant 0 : index
    %c0_3 = arith.constant 0 : index
    %5 = vector.load %arg3[%c0_2, %c0_3] : memref<1x2048xf32, #tpu.memory_space<vmem>>, vector<1x2048xf32>
    tpu.vector_store %arg3[%c0_2, %c0_3], %4 {strides = array<i32>} : memref<1x2048xf32, #tpu.memory_space<vmem>>, vector<1x2048xf32>,
    return
  }
  func.func @transform_0(%arg0: i32) -> i32 {
    %c0_i32 = arith.constant 0 : i32
    %c0_i32_0 = arith.constant 0 : i32
    return %c0_i32 : i32
  }
  func.func @transform_1(%arg0: i32) -> (i32, i32) {
    %c0_i32 = arith.constant 0 : i32
    %c0_i32_0 = arith.constant 0 : i32
    return %arg0, %c0_i32 : i32, i32
  }
  func.func @transform_2(%arg0: i32) -> (i32, i32) {
    %c0_i32 = arith.constant 0 : i32
    %c0_i32_0 = arith.constant 0 : i32
    return %arg0, %c0_i32 : i32, i32
  }
}

</mosaic_0001>

<llo_original>
// kernel: tpu_custom_call.1
$region0: #{tpu_custom_call.1}
  #allocation0 [shape = 'u32[]', space=smem, size = 0x4, offset = 0x4, fixed_abs, tag = 'smem constant byte address 0x4 - core index']
  #allocation1 [shape = 'u32[144,128]{1,0:T(1,128)}', space=vmem, size = 0x12000, scoped, tag = 'internal scratch']
  #allocation2 [shape = 'f32[1]{0:T(128)S(6)}', space=smem, size = 0x200, scoped, tag = 'scoped memory for tpu_custom_call.1']
  %s0 = inlined_call_operand.<no memory space> [shape: f32[1], index: 0, kind: input, shape index: {}]
  %s1 = inlined_call_operand.hbm [shape: f32[1,2048], index: 1, kind: input, shape index: {}]
  %s2 = inlined_call_operand.hbm [shape: f32[1,2048], index: 2, kind: output, shape index: {}]
  %s3 = sld [smem:[#allocation0]]
  $region22: #{tpu_custom_call.1} parent=0
    _
  %s5 = ssub.s32 1, %s3
  %s6 = scalar_select 0, %s5, %s3
  %7 = sst [smem:[#allocation2]] %s0
  $region1: #{tpu_custom_call.1} parent=0
    #allocation3 [shape = 'u8[8192]{0}', space=vmem, size = 0x2000, scoped, tag = 'input window, operand 1, single buffered']
    #allocation4 [shape = 's32[1]{0}', space=sflag, size = 0x4, scoped, tag = 'scoped memory for tpu_custom_call.1']
    #allocation5 [shape = 's32[1]{0}', space=sflag, size = 0x4, scoped, tag = 'scoped memory for tpu_custom_call.1']
    #allocation6 [shape = 'u8[8192]{0}', space=vmem, size = 0x2000, scoped, tag = 'output window, operand 0, single buffered']
    %8 = vsyncpa [#allocation4], 0
    %9 = vsyncpa [#allocation5], 0
    // Predicated region
    $region2: #{tpu_custom_call.1} parent=1 // pred_check
      _
    $region3: #{tpu_custom_call.1} parent=1 // pred_check_branch
      %11 = sbr.rel (0) target = $region5
    $region4: #{tpu_custom_call.1} parent=1 // pred_region
      _
    $region5: #{tpu_custom_call.1} parent=1 // pred_fallthru
      _
    // Predicated region
    $region6: #{tpu_custom_call.1} parent=1 // pred_check
      _
    $region7: #{tpu_custom_call.1} parent=1 // pred_check_branch
      %13 = sbr.rel (0) target = $region9
    $region8: #{tpu_custom_call.1} parent=1 // pred_region
      %s15 = ssub.s32 256, 256
      %16 = vsyncadd [#allocation4], %s15
      %s18 = sshll.u32 [#allocation3], 4
      %s19 = int_to_ptr.vmem [resolvable:$true] %s18
      %21 = dma.hbm_to_vmem [thread:$0]  %s1, 256, %s19, [#allocation4]
    $region9: #{tpu_custom_call.1} parent=1 // pred_fallthru
      _
    // Predicated region
    $region10: #{tpu_custom_call.1} parent=1 // pred_check
      _
    $region11: #{tpu_custom_call.1} parent=1 // pred_check_branch
      %23 = sbr.rel (0) target = $region13
    $region12: #{tpu_custom_call.1} parent=1 // pred_region
      %24 = dma.done [#allocation4], 256
    $region13: #{tpu_custom_call.1} parent=1 // pred_fallthru
      _
    %s25 = sld [smem:[#allocation2]]
    %s26 = smul.f32 %s25, 0.0
    %v27 = vld [vmem:[#allocation3] sm:$0xff]
    %v28 = vld [vmem:[#allocation3 + $0x8] sm:$0xff]
    %v29 = vstv %s26
    %v30 = vadd.f32 %v27, %v29
    %v31 = vadd.f32 %v28, %v29
    %32 = vst [vmem:[#allocation6] sm:$0xff] %v30
    %33 = vst [vmem:[#allocation6 + $0x8] sm:$0xff] %v31
    // Predicated region
    $region14: #{tpu_custom_call.1} parent=1 // pred_check
      _
    $region15: #{tpu_custom_call.1} parent=1 // pred_check_branch
      %35 = sbr.rel (0) target = $region17
    $region16: #{tpu_custom_call.1} parent=1 // pred_region
      %s37 = ssub.s32 256, 256
      %38 = vsyncadd [#allocation5], %s37
      %s40 = sshll.u32 [#allocation6], 4
      %s41 = int_to_ptr.vmem [resolvable:$true] %s40
      %43 = dma.vmem_to_hbm [thread:$0]  %s41, 256, %s2, [#allocation5]
    $region17: #{tpu_custom_call.1} parent=1 // pred_fallthru
      _
    // Predicated region
    $region18: #{tpu_custom_call.1} parent=1 // pred_check
      _
    $region19: #{tpu_custom_call.1} parent=1 // pred_check_branch
      %45 = sbr.rel (0) target = $region21
    $region20: #{tpu_custom_call.1} parent=1 // pred_region
      %46 = dma.done [#allocation5], 256
    $region21: #{tpu_custom_call.1} parent=1 // pred_fallthru
      _
    %47 = vsyncpa [#allocation4], 1
    %48 = vsyncpa [#allocation5], 1

</llo_original>
